<compile_context>
chip_gen: v5e
topology: v5e:2x2
jax: 0.10.0
libtpu: 0.0.40
codegen_flags: <defaults>
</compile_context>

<pallas_src>
import functools

import jax
import jax.numpy as jnp
from jax.experimental import pallas as pl
from jax.experimental.pallas import tpu as pltpu

STATE_DIM = 24      # BipedalWalker-v2 observation dim
ACTION_DIM = 4      # BipedalWalker-v2 action dim
MAX_ACTION = 1.0    # env.action_space.high[0]

H1, H2 = 400, 300                       # logical hidden sizes (PyTorch module)
SDIMP, H1P, H2P, OUTP = 32, 512, 384, 8  # padded sizes used inside the kernel


def _cdiv(a, b):
    return -(-a // b)


def _round_up(x, m):
    return ((x + m - 1) // m) * m


def _choose_tiling(B):
    """Return (tile_b, b_pad, n_tiles)."""
    if B <= 512:
        # Single grid step: no per-step overhead, weights DMA'd exactly once.
        tile_b = max(8, _round_up(B, 8))
        return tile_b, tile_b, 1
    # Large batch: tiles of up to 1024 rows (multiple of 256 for the MXU), and
    # an even number of grid steps so v7x's 2 TensorCores split the batch.
    n_tiles = max(2, _round_up(_cdiv(B, 1024), 2))
    tile_b = _round_up(_cdiv(B, n_tiles), 256)
    return tile_b, tile_b * n_tiles, n_tiles


def _actor_kernel(max_action, x_ref, w1_ref, b1_ref, w2_ref, b2_ref,
                  w3_ref, b3_ref, o_ref):
    # fc1 + relu  (bf16 MXU inputs, f32 accumulation, f32 elementwise)
    x = x_ref[...].astype(jnp.bfloat16)
    h = jnp.dot(x, w1_ref[...], preferred_element_type=jnp.float32)
    h = jnp.maximum(h + b1_ref[...], 0.0)
    # fc2 + relu
    h = jnp.dot(h.astype(jnp.bfloat16), w2_ref[...],
                preferred_element_type=jnp.float32)
    h = jnp.maximum(h + b2_ref[...], 0.0)
    # fc3 + tanh * max_action  (narrow 8-lane output, wrapper slices to 4)
    h = jnp.dot(h.astype(jnp.bfloat16), w3_ref[...],
                preferred_element_type=jnp.float32)
    o_ref[...] = (jnp.tanh(h + b3_ref[...]) * max_action).astype(o_ref.dtype)


@functools.partial(jax.jit, static_argnames=("max_action",))
def actor_forward(state, padded_params, max_action=MAX_ACTION):
    """state: (B, STATE_DIM) f32.  padded_params: dict from prepare_params()."""
    B = state.shape[0]
    tile_b, b_pad, n_tiles = _choose_tiling(B)
    # Pad batch rows to the tiled extent and state columns 24 -> 32.
    state = jnp.pad(state, ((0, b_pad - B), (0, SDIMP - STATE_DIM)))

    p = padded_params
    w1, b1, w2, b2, w3, b3 = p["w1"], p["b1"], p["w2"], p["b2"], p["w3"], p["b3"]

    # Weights/biases: full-array blocks with constant index_maps -> DMA'd once,
    # VMEM-resident.  State/output: batch-tiled, double-buffered by Pallas.
    resident = lambda shape: pl.BlockSpec(shape, lambda i: (0, 0))
    grid_spec = pltpu.PrefetchScalarGridSpec(
        num_scalar_prefetch=0,
        grid=(n_tiles,),
        in_specs=[
            pl.BlockSpec((tile_b, SDIMP), lambda i: (i, 0)),
            resident((SDIMP, H1P)), resident((1, H1P)),
            resident((H1P, H2P)),   resident((1, H2P)),
            resident((H2P, OUTP)),  resident((1, OUTP)),
        ],
        out_specs=pl.BlockSpec((tile_b, OUTP), lambda i: (i, 0)),
    )

    weight_bytes = ((w1.size + w2.size + w3.size) * 2
                    + (b1.size + b2.size + b3.size) * 4)
    cost = pl.CostEstimate(
        flops=2 * b_pad * (SDIMP * H1P + H1P * H2P + H2P * OUTP),
        transcendentals=b_pad * OUTP,
        bytes_accessed=weight_bytes + b_pad * (SDIMP + OUTP) * 4,
    )

    kernel = functools.partial(_actor_kernel, max_action)
    out = pl.pallas_call(
        kernel,
        out_shape=jax.ShapeDtypeStruct((b_pad, OUTP), jnp.float32),
        grid_spec=grid_spec,
        compiler_params=pltpu.CompilerParams(
            dimension_semantics=("parallel",)),
        cost_estimate=cost,
    )(state, w1, b1, w2, b2, w3, b3)
    return out[:B, :ACTION_DIM]


def init_params(key):
    """PyTorch-style uniform(-1/sqrt(fan_in), 1/sqrt(fan_in)), f32, (in, out)."""
    def linear(key, fan_in, fan_out):
        kw, kb = jax.random.split(key)
        bound = 1.0 / jnp.sqrt(fan_in)
        w = jax.random.uniform(kw, (fan_in, fan_out), jnp.float32, -bound, bound)
        b = jax.random.uniform(kb, (1, fan_out), jnp.float32, -bound, bound)
        return w, b

    k1, k2, k3 = jax.random.split(key, 3)
    w1, b1 = linear(k1, STATE_DIM, H1)
    w2, b2 = linear(k2, H1, H2)
    w3, b3 = linear(k3, H2, ACTION_DIM)
    return {"w1": w1, "b1": b1, "w2": w2, "b2": b2, "w3": w3, "b3": b3}


def prepare_params(params):
    """Zero-pad to kernel shapes; weights bf16, biases f32.

    Padding rows/cols are exact zeros, so ReLU keeps them inert and the padded
    lanes of the output are exactly tanh(0)*max_action contributions of zero
    weight columns -> sliced off by the wrapper.
    """
    def pad2(a, rows, cols):
        return jnp.pad(a, ((0, rows - a.shape[0]), (0, cols - a.shape[1])))

    w1 = pad2(params["w1"], SDIMP, H1P).astype(jnp.bfloat16)
    b1 = pad2(params["b1"], 1, H1P)
    w2 = pad2(params["w2"], H1P, H2P).astype(jnp.bfloat16)
    b2 = pad2(params["b2"], 1, H2P)
    w3 = pad2(params["w3"], H2P, OUTP).astype(jnp.bfloat16)
    b3 = pad2(params["b3"], 1, OUTP)
    return {"w1": w1, "b1": b1, "w2": w2, "b2": b2, "w3": w3, "b3": b3}


def actor_ref_padded(state, pp, max_action=MAX_ACTION):
    """Pure-JAX reference using identical (bf16-in, f32-acc) arithmetic."""
    x = jnp.pad(state, ((0, 0), (0, SDIMP - STATE_DIM))).astype(jnp.bfloat16)
    h = jnp.maximum(
        jnp.dot(x, pp["w1"], preferred_element_type=jnp.float32) + pp["b1"], 0.0)
    h = jnp.maximum(
        jnp.dot(h.astype(jnp.bfloat16), pp["w2"],
                preferred_element_type=jnp.float32) + pp["b2"], 0.0)
    h = jnp.dot(h.astype(jnp.bfloat16), pp["w3"],
                preferred_element_type=jnp.float32)
    return (jnp.tanh(h + pp["b3"]) * max_action)[:, :ACTION_DIM]


def actor_ref_f32(state, params, max_action=MAX_ACTION):
    """Full-precision reference of the original PyTorch module (semantic check)."""
    h = jnp.maximum(state @ params["w1"] + params["b1"], 0.0)
    h = jnp.maximum(h @ params["w2"] + params["b2"], 0.0)
    return jnp.tanh(h @ params["w3"] + params["b3"]) * max_action


if __name__ == "__main__":
    key = jax.random.PRNGKey(0)
    kp, kx1, kx2 = jax.random.split(key, 3)
    params = init_params(kp)
    padded = prepare_params(params)

    # Small rollout-style batch (single grid step).
    batch = 2
    state = jax.random.normal(kx1, (batch, STATE_DIM), jnp.float32)
    out = actor_forward(state, padded)
    jax.block_until_ready(out)
    assert out.shape == (batch, ACTION_DIM), out.shape

    ref_bf16 = actor_ref_padded(state, padded)
    assert jnp.allclose(out, ref_bf16, atol=1e-3, rtol=1e-3), (out, ref_bf16)
    ref_f32 = actor_ref_f32(state, params)
    assert jnp.allclose(out, ref_f32, atol=5e-2, rtol=5e-2), (out, ref_f32)

    # Medium batch exercising the multi-tile path (even grid + row padding).
    batch2 = 600
    state2 = jax.random.normal(kx2, (batch2, STATE_DIM), jnp.float32)
    out2 = actor_forward(state2, padded)
    jax.block_until_ready(out2)
    assert out2.shape == (batch2, ACTION_DIM), out2.shape
    ref2 = actor_ref_padded(state2, padded)
    assert jnp.allclose(out2, ref2, atol=1e-3, rtol=1e-3)
    ref2_f32 = actor_ref_f32(state2, params)
    assert jnp.allclose(out2, ref2_f32, atol=5e-2, rtol=5e-2)

    print("KERNEL_OK")
</pallas_src>

<mosaic_0001>
module attributes {stable_mosaic.version = 11 : i64} {
  func.func @_actor_kernel(%arg0: i32, %arg1: memref<8x32xf32, #tpu.memory_space<vmem>>, %arg2: memref<32x512xbf16, #tpu.memory_space<vmem>>, %arg3: memref<1x512xf32, #tpu.memory_space<vmem>>, %arg4: memref<512x384xbf16, #tpu.memory_space<vmem>>, %arg5: memref<1x384xf32, #tpu.memory_space<vmem>>, %arg6: memref<384x8xbf16, #tpu.memory_space<vmem>>, %arg7: memref<1x8xf32, #tpu.memory_space<vmem>>, %arg8: memref<8x8xf32, #tpu.memory_space<vmem>>) attributes {dimension_semantics = [#tpu.dimension_semantics<parallel>], iteration_bounds = array<i64: 1>, scalar_prefetch = 0 : i64, scratch_operands = 0 : i64, tpu.core_type = #tpu.core_type<tc>, window_params = [{transform_indices = @transform_0, window_bounds = array<i64: 8, 32>}, {pipeline_mode = #tpu.pipeline_mode<synchronous>, transform_indices = @transform_1, window_bounds = array<i64: 32, 512>}, {pipeline_mode = #tpu.pipeline_mode<synchronous>, transform_indices = @transform_2, window_bounds = array<i64: 1, 512>}, {pipeline_mode = #tpu.pipeline_mode<synchronous>, transform_indices = @transform_3, window_bounds = array<i64: 512, 384>}, {pipeline_mode = #tpu.pipeline_mode<synchronous>, transform_indices = @transform_4, window_bounds = array<i64: 1, 384>}, {pipeline_mode = #tpu.pipeline_mode<synchronous>, transform_indices = @transform_5, window_bounds = array<i64: 384, 8>}, {pipeline_mode = #tpu.pipeline_mode<synchronous>, transform_indices = @transform_6, window_bounds = array<i64: 1, 8>}, {transform_indices = @transform_7, window_bounds = array<i64: 8, 8>}]} {
    %c0 = arith.constant 0 : index
    %c0_0 = arith.constant 0 : index
    %0 = vector.load %arg1[%c0, %c0_0] : memref<8x32xf32, #tpu.memory_space<vmem>>, vector<8x32xf32>
    %1 = arith.truncf %0 : vector<8x32xf32> to vector<8x32xbf16>
    %c0_1 = arith.constant 0 : index
    %c0_2 = arith.constant 0 : index
    %2 = vector.load %arg2[%c0_1, %c0_2] : memref<32x512xbf16, #tpu.memory_space<vmem>>, vector<32x512xbf16>
    %cst = arith.constant dense<0.000000e+00> : vector<8x512xf32>
    %3 = tpu.matmul %1, %2, %cst {dimension_numbers = #tpu.dot_dimension_numbers<[1], [0], [0], [1], [0, 0, 1, 1], [], []>} : vector<8x32xbf16>, vector<32x512xbf16>, vector<8x512xf32> -> vector<8x512xf32>
    %c0_3 = arith.constant 0 : index
    %c0_4 = arith.constant 0 : index
    %4 = vector.load %arg3[%c0_3, %c0_4] : memref<1x512xf32, #tpu.memory_space<vmem>>, vector<1x512xf32>
    %5 = vector.broadcast %4 : vector<1x512xf32> to vector<8x512xf32>
    %6 = arith.addf %3, %5 : vector<8x512xf32>
    %cst_5 = arith.constant 0.000000e+00 : f32
    %7 = vector.broadcast %cst_5 : f32 to vector<8x512xf32>
    %8 = arith.maximumf %6, %7 : vector<8x512xf32>
    %9 = arith.truncf %8 : vector<8x512xf32> to vector<8x512xbf16>
    %c0_6 = arith.constant 0 : index
    %c0_7 = arith.constant 0 : index
    %10 = vector.load %arg4[%c0_6, %c0_7] : memref<512x384xbf16, #tpu.memory_space<vmem>>, vector<512x384xbf16>
    %cst_8 = arith.constant dense<0.000000e+00> : vector<8x384xf32>
    %11 = tpu.matmul %9, %10, %cst_8 {dimension_numbers = #tpu.dot_dimension_numbers<[1], [0], [0], [1], [0, 0, 1, 1], [], []>} : vector<8x512xbf16>, vector<512x384xbf16>, vector<8x384xf32> -> vector<8x384xf32>
    %c0_9 = arith.constant 0 : index
    %c0_10 = arith.constant 0 : index
    %12 = vector.load %arg5[%c0_9, %c0_10] : memref<1x384xf32, #tpu.memory_space<vmem>>, vector<1x384xf32>
    %13 = vector.broadcast %12 : vector<1x384xf32> to vector<8x384xf32>
    %14 = arith.addf %11, %13 : vector<8x384xf32>
    %cst_11 = arith.constant 0.000000e+00 : f32
    %15 = vector.broadcast %cst_11 : f32 to vector<8x384xf32>
    %16 = arith.maximumf %14, %15 : vector<8x384xf32>
    %17 = arith.truncf %16 : vector<8x384xf32> to vector<8x384xbf16>
    %c0_12 = arith.constant 0 : index
    %c0_13 = arith.constant 0 : index
    %18 = vector.load %arg6[%c0_12, %c0_13] : memref<384x8xbf16, #tpu.memory_space<vmem>>, vector<384x8xbf16>
    %cst_14 = arith.constant dense<0.000000e+00> : vector<8x8xf32>
    %19 = tpu.matmul %17, %18, %cst_14 {dimension_numbers = #tpu.dot_dimension_numbers<[1], [0], [0], [1], [0, 0, 1, 1], [], []>} : vector<8x384xbf16>, vector<384x8xbf16>, vector<8x8xf32> -> vector<8x8xf32>
    %c0_15 = arith.constant 0 : index
    %c0_16 = arith.constant 0 : index
    %20 = vector.load %arg7[%c0_15, %c0_16] : memref<1x8xf32, #tpu.memory_space<vmem>>, vector<1x8xf32>
    %21 = vector.broadcast %20 : vector<1x8xf32> to vector<8x8xf32>
    %22 = arith.addf %19, %21 : vector<8x8xf32>
    %23 = math.tanh %22 : vector<8x8xf32>
    %cst_17 = arith.constant 1.000000e+00 : f32
    %24 = vector.broadcast %cst_17 : f32 to vector<8x8xf32>
    %25 = arith.mulf %23, %24 : vector<8x8xf32>
    %c0_18 = arith.constant 0 : index
    %c0_19 = arith.constant 0 : index
    %26 = vector.load %arg8[%c0_18, %c0_19] : memref<8x8xf32, #tpu.memory_space<vmem>>, vector<8x8xf32>
    tpu.vector_store %arg8[%c0_18, %c0_19], %25 {strides = array<i32>} : memref<8x8xf32, #tpu.memory_space<vmem>>, vector<8x8xf32>,
    return
  }
  func.func @transform_0(%arg0: i32) -> (i32, i32) {
    %c0_i32 = arith.constant 0 : i32
    %c0_i32_0 = arith.constant 0 : i32
    return %arg0, %c0_i32 : i32, i32
  }
  func.func @transform_1(%arg0: i32) -> (i32, i32) {
    %c0_i32 = arith.constant 0 : i32
    %c0_i32_0 = arith.constant 0 : i32
    %c0_i32_1 = arith.constant 0 : i32
    return %c0_i32, %c0_i32_0 : i32, i32
  }
  func.func @transform_2(%arg0: i32) -> (i32, i32) {
    %c0_i32 = arith.constant 0 : i32
    %c0_i32_0 = arith.constant 0 : i32
    %c0_i32_1 = arith.constant 0 : i32
    return %c0_i32, %c0_i32_0 : i32, i32
  }
  func.func @transform_3(%arg0: i32) -> (i32, i32) {
    %c0_i32 = arith.constant 0 : i32
    %c0_i32_0 = arith.constant 0 : i32
    %c0_i32_1 = arith.constant 0 : i32
    return %c0_i32, %c0_i32_0 : i32, i32
  }
  func.func @transform_4(%arg0: i32) -> (i32, i32) {
    %c0_i32 = arith.constant 0 : i32
    %c0_i32_0 = arith.constant 0 : i32
    %c0_i32_1 = arith.constant 0 : i32
    return %c0_i32, %c0_i32_0 : i32, i32
  }
  func.func @transform_5(%arg0: i32) -> (i32, i32) {
    %c0_i32 = arith.constant 0 : i32
    %c0_i32_0 = arith.constant 0 : i32
    %c0_i32_1 = arith.constant 0 : i32
    return %c0_i32, %c0_i32_0 : i32, i32
  }
  func.func @transform_6(%arg0: i32) -> (i32, i32) {
    %c0_i32 = arith.constant 0 : i32
    %c0_i32_0 = arith.constant 0 : i32
    %c0_i32_1 = arith.constant 0 : i32
    return %c0_i32, %c0_i32_0 : i32, i32
  }
  func.func @transform_7(%arg0: i32) -> (i32, i32) {
    %c0_i32 = arith.constant 0 : i32
    %c0_i32_0 = arith.constant 0 : i32
    return %arg0, %c0_i32 : i32, i32
  }
}

</mosaic_0001>

<llo_original>
// kernel: actor_forward.1
$region0: #{actor_forward.1}
  #allocation0 [shape = 'u32[]', space=smem, size = 0x4, offset = 0x4, fixed_abs, tag = 'smem constant byte address 0x4 - core index']
  #allocation1 [shape = 'u32[72,128]{1,0:T(1,128)}', space=vmem, size = 0x9000, scoped, tag = 'internal scratch']
  %s0 = inlined_call_operand.vmem [shape: f32[8,32], index: 0, kind: input, shape index: {}]
  %s1 = inlined_call_operand.vmem [shape: bf16[32,512], index: 1, kind: input, shape index: {}]
  %s2 = inlined_call_operand.vmem [shape: f32[1,512], index: 2, kind: input, shape index: {}]
  %s3 = inlined_call_operand.hbm [shape: bf16[512,384], index: 3, kind: input, shape index: {}]
  %s4 = inlined_call_operand.vmem [shape: f32[1,384], index: 4, kind: input, shape index: {}]
  %s5 = inlined_call_operand.vmem [shape: bf16[384,8], index: 5, kind: input, shape index: {}]
  %s6 = inlined_call_operand.vmem [shape: f32[1,8], index: 6, kind: input, shape index: {}]
  %s7 = inlined_call_operand.vmem [shape: f32[8,8], index: 7, kind: output, shape index: {}]
  %s8 = sld [smem:[#allocation0]]
  $region42: #{actor_forward.1} parent=0
    _
  %s10 = ssub.s32 1, %s8
  %s11 = scalar_select 0, %s10, %s8
  $region1: #{actor_forward.1} parent=0
    #allocation2 [shape = 'u8[393216]{0}', space=vmem, size = 0x60000, scoped, tag = 'input window, operand 3, single buffered']
    #allocation3 [shape = 's32[1]{0}', space=sflag, size = 0x4, scoped, tag = 'scoped memory for actor_forward.1']
    %12 = vsyncpa [#allocation3], 0
    // Predicated region
    $region2: #{actor_forward.1} parent=1 // pred_check
      _
    $region3: #{actor_forward.1} parent=1 // pred_check_branch
      %14 = sbr.rel (0) target = $region5
    $region4: #{actor_forward.1} parent=1 // pred_region
      _
    $region5: #{actor_forward.1} parent=1 // pred_fallthru
      _
    // Predicated region
    $region6: #{actor_forward.1} parent=1 // pred_check
      _
    $region7: #{actor_forward.1} parent=1 // pred_check_branch
      %16 = sbr.rel (0) target = $region9
    $region8: #{actor_forward.1} parent=1 // pred_region
      _
    $region9: #{actor_forward.1} parent=1 // pred_fallthru
      _
    // Predicated region
    $region10: #{actor_forward.1} parent=1 // pred_check
      _
    $region11: #{actor_forward.1} parent=1 // pred_check_branch
      %18 = sbr.rel (0) target = $region13
    $region12: #{actor_forward.1} parent=1 // pred_region
      _
    $region13: #{actor_forward.1} parent=1 // pred_fallthru
      _
    // Predicated region
    $region14: #{actor_forward.1} parent=1 // pred_check
      _
    $region15: #{actor_forward.1} parent=1 // pred_check_branch
      %20 = sbr.rel (0) target = $region17
    $region16: #{actor_forward.1} parent=1 // pred_region
      %22 = vsyncadd [#allocation3], 0
      %s23 = sshll.u32 %s3, 4
      %s24 = int_to_ptr.hbm [resolvable:$true] %s23
      %s25 = sshll.u32 [#allocation2], 4
      %s26 = int_to_ptr.vmem [resolvable:$true] %s25
      %31 = dma.hbm_to_vmem [thread:$0]  %s24, 12288, %s26, [#allocation3], 192, 192, 12
    $region17: #{actor_forward.1} parent=1 // pred_fallthru
      _
    // Predicated region
    $region18: #{actor_forward.1} parent=1 // pred_check
      _
    $region19: #{actor_forward.1} parent=1 // pred_check_branch
      %33 = sbr.rel (0) target = $region21
    $region20: #{actor_forward.1} parent=1 // pred_region
      _
    $region21: #{actor_forward.1} parent=1 // pred_fallthru
      _
    // Predicated region
    $region22: #{actor_forward.1} parent=1 // pred_check
      _
    $region23: #{actor_forward.1} parent=1 // pred_check_branch
      %35 = sbr.rel (0) target = $region25
    $region24: #{actor_forward.1} parent=1 // pred_region
      _
    $region25: #{actor_forward.1} parent=1 // pred_fallthru
      _
    // Predicated region
    $region26: #{actor_forward.1} parent=1 // pred_check
      _
    $region27: #{actor_forward.1} parent=1 // pred_check_branch
      %37 = sbr.rel (0) target = $region29
    $region28: #{actor_forward.1} parent=1 // pred_region
      _
    $region29: #{actor_forward.1} parent=1 // pred_fallthru
      _
    // Predicated region
    $region30: #{actor_forward.1} parent=1 // pred_check
      _
    $region31: #{actor_forward.1} parent=1 // pred_check_branch
      %39 = sbr.rel (0) target = $region33
    $region32: #{actor_forward.1} parent=1 // pred_region
      %41 = dma.done [#allocation3], 12288
    $region33: #{actor_forward.1} parent=1 // pred_fallthru
      _
    %v43 = vld [vmem:[%s0] sm:$0xff]
    %v44 = vpack.c.bf16 %v43, %v43
    %v45 = vld [vmem:[%s1] sm:$0xff]
    %v46 = vld [vmem:[%s1 + $0x8] sm:$0xff]
    %v47 = vld [vmem:[%s1 + $0x10] sm:$0xff]
    %v48 = vld [vmem:[%s1 + $0x18] sm:$0xff]
    %v49 = vld [vmem:[%s1 + $0x20] sm:$0xff]
    %v50 = vld [vmem:[%s1 + $0x28] sm:$0xff]
    %v51 = vld [vmem:[%s1 + $0x30] sm:$0xff]
    %v52 = vld [vmem:[%s1 + $0x38] sm:$0xff]
    %v53 = vld [vmem:[%s2] sm:$0xf]
    %v55 = vperm.slane %v53, 0
    %v56 = vperm.slane %v53, 1
    %v57 = vperm.slane %v53, 2
    %v58 = vperm.slane %v53, 3
    %v71 = vunpack.c.l.b16 %v45
    %v72 = vunpack.c.h.b16 %v45
    %v73 = vunpack.c.l.b16 %v46
    %v74 = vunpack.c.h.b16 %v46
    %v75 = vunpack.c.l.b16 %v47
    %v76 = vunpack.c.h.b16 %v47
    %v77 = vunpack.c.l.b16 %v48
    %v78 = vunpack.c.h.b16 %v48
    %v79 = vunpack.c.l.b16 %v49
    %v80 = vunpack.c.h.b16 %v49
    %v81 = vunpack.c.l.b16 %v50
    %v82 = vunpack.c.h.b16 %v50
    %v83 = vunpack.c.l.b16 %v51
    %v84 = vunpack.c.h.b16 %v51
    %v85 = vunpack.c.l.b16 %v52
    %v86 = vunpack.c.h.b16 %v52
    %v87 = vpack.c.b16 %v75, %v71
    %v88 = vpack.c.b16 %v76, %v72
    %v89 = vpack.c.b16 %v77, %v73
    %v90 = vpack.c.b16 %v78, %v74
    %v91 = vpack.c.b16 %v83, %v79
    %v92 = vpack.c.b16 %v84, %v80
    %v93 = vpack.c.b16 %v85, %v81
    %v94 = vpack.c.b16 %v86, %v82
    %vm103 = vcmask 261120
    %v105 = vsel %vm103, %v44, 0
    %107 = vmatpush.bf16.msra.mxu0 0
    %108 = vmatpush.bf16.msra.mxu0 0
    %109 = vmatpush.bf16.msra.mxu0 0
    %110 = vmatpush.bf16.msra.mxu0 0
    %111 = vmatpush.bf16.msra.mxu0 0
    %112 = vmatpush.bf16.msra.mxu0 0
    %113 = vmatpush.bf16.msra.mxu0 %v91
    %114 = vmatpush.bf16.msra.mxu0 %v87
    %115 = vmatmul.bf16.gmra.mxu0 %v105
    %v116 = vpop.f32.mrf.mxu0
    %v117 = vadd.f32 %v55, %v116
    %v118 = vpop.f32.mrf.mxu0
    %119 = vdwg.mxu0
    %120 = vmatpush.bf16.msra.mxu0 0
    %121 = vmatpush.bf16.msra.mxu0 0
    %122 = vmatpush.bf16.msra.mxu0 0
    %123 = vmatpush.bf16.msra.mxu0 0
    %124 = vmatpush.bf16.msra.mxu0 0
    %125 = vmatpush.bf16.msra.mxu0 0
    %126 = vmatpush.bf16.msra.mxu0 %v92
    %127 = vmatpush.bf16.msra.mxu0 %v88
    %128 = vmatmul.bf16.gmra.mxu0 %v105
    %v129 = vpop.f32.mrf.mxu0
    %v130 = vadd.f32 %v56, %v129
    %v131 = vpop.f32.mrf.mxu0
    %132 = vdwg.mxu0
    %133 = vmatpush.bf16.msra.mxu0 0
    %134 = vmatpush.bf16.msra.mxu0 0
    %135 = vmatpush.bf16.msra.mxu0 0
    %136 = vmatpush.bf16.msra.mxu0 0
    %137 = vmatpush.bf16.msra.mxu0 0
    %138 = vmatpush.bf16.msra.mxu0 0
    %139 = vmatpush.bf16.msra.mxu0 %v93
    %140 = vmatpush.bf16.msra.mxu0 %v89
    %141 = vmatmul.bf16.gmra.mxu0 %v105
    %v142 = vpop.f32.mrf.mxu0
    %v143 = vadd.f32 %v57, %v142
    %v144 = vpop.f32.mrf.mxu0
    %145 = vdwg.mxu0
    %146 = vmatpush.bf16.msra.mxu0 0
    %147 = vmatpush.bf16.msra.mxu0 0
    %148 = vmatpush.bf16.msra.mxu0 0
    %149 = vmatpush.bf16.msra.mxu0 0
    %150 = vmatpush.bf16.msra.mxu0 0
    %151 = vmatpush.bf16.msra.mxu0 0
    %152 = vmatpush.bf16.msra.mxu0 %v94
    %153 = vmatpush.bf16.msra.mxu0 %v90
    %154 = vmatmul.bf16.gmra.mxu0 %v105
    %v155 = vpop.f32.mrf.mxu0
    %v156 = vadd.f32 %v58, %v155
    %v157 = vpop.f32.mrf.mxu0
    %158 = vdwg.mxu0
    %v159 = vmax.f32 %v117, 0.0
    %v160 = vmax.f32 %v130, 0.0
    %v161 = vmax.f32 %v143, 0.0
    %v162 = vmax.f32 %v156, 0.0
    %v163 = vpack.c.bf16 %v159, %v159
    %v164 = vpack.c.bf16 %v160, %v160
    %v165 = vpack.c.bf16 %v161, %v161
    %v166 = vpack.c.bf16 %v162, %v162
    %v167 = vld [vmem:[#allocation2] sm:$0xff]
    %v168 = vld [vmem:[#allocation2 + $0x8] sm:$0xf]
    %v169 = vld [vmem:[#allocation2 + $0xc] sm:$0xff]
    %v170 = vld [vmem:[#allocation2 + $0x14] sm:$0xf]
    %v171 = vld [vmem:[#allocation2 + $0x18] sm:$0xff]
    %v172 = vld [vmem:[#allocation2 + $0x20] sm:$0xf]
    %v173 = vld [vmem:[#allocation2 + $0x24] sm:$0xff]
    %v174 = vld [vmem:[#allocation2 + $0x2c] sm:$0xf]
    %v175 = vld [vmem:[#allocation2 + $0x30] sm:$0xff]
    %v176 = vld [vmem:[#allocation2 + $0x38] sm:$0xf]
    %v177 = vld [vmem:[#allocation2 + $0x3c] sm:$0xff]
    %v178 = vld [vmem:[#allocation2 + $0x44] sm:$0xf]
    %v179 = vld [vmem:[#allocation2 + $0x48] sm:$0xff]
    %v180 = vld [vmem:[#allocation2 + $0x50] sm:$0xf]
    %v181 = vld [vmem:[#allocation2 + $0x54] sm:$0xff]
    %v182 = vld [vmem:[#allocation2 + $0x5c] sm:$0xf]
    %v183 = vld [vmem:[#allocation2 + $0x60] sm:$0xff]
    %v184 = vld [vmem:[#allocation2 + $0x68] sm:$0xf]
    %v185 = vld [vmem:[#allocation2 + $0x6c] sm:$0xff]
    %v186 = vld [vmem:[#allocation2 + $0x74] sm:$0xf]
    %v187 = vld [vmem:[#allocation2 + $0x78] sm:$0xff]
    %v188 = vld [vmem:[#allocation2 + $0x80] sm:$0xf]
    %v189 = vld [vmem:[#allocation2 + $0x84] sm:$0xff]
    %v190 = vld [vmem:[#allocation2 + $0x8c] sm:$0xf]
    %v191 = vld [vmem:[#allocation2 + $0x90] sm:$0xff]
    %v192 = vld [vmem:[#allocation2 + $0x98] sm:$0xf]
    %v193 = vld [vmem:[#allocation2 + $0x9c] sm:$0xff]
    %v194 = vld [vmem:[#allocation2 + $0xa4] sm:$0xf]
    %v195 = vld [vmem:[#allocation2 + $0xa8] sm:$0xff]
    %v196 = vld [vmem:[#allocation2 + $0xb0] sm:$0xf]
    %v197 = vld [vmem:[#allocation2 + $0xb4] sm:$0xff]
    %v198 = vld [vmem:[#allocation2 + $0xbc] sm:$0xf]
    %v199 = vld [vmem:[#allocation2 + $0xc0] sm:$0xff]
    %v200 = vld [vmem:[#allocation2 + $0xc8] sm:$0xf]
    %v201 = vld [vmem:[#allocation2 + $0xcc] sm:$0xff]
    %v202 = vld [vmem:[#allocation2 + $0xd4] sm:$0xf]
    %v203 = vld [vmem:[#allocation2 + $0xd8] sm:$0xff]
    %v204 = vld [vmem:[#allocation2 + $0xe0] sm:$0xf]
    %v205 = vld [vmem:[#allocation2 + $0xe4] sm:$0xff]
    %v206 = vld [vmem:[#allocation2 + $0xec] sm:$0xf]
    %v207 = vld [vmem:[#allocation2 + $0xf0] sm:$0xff]
    %v208 = vld [vmem:[#allocation2 + $0xf8] sm:$0xf]
    %v209 = vld [vmem:[#allocation2 + $0xfc] sm:$0xff]
    %v210 = vld [vmem:[#allocation2 + $0x104] sm:$0xf]
    %v211 = vld [vmem:[#allocation2 + $0x108] sm:$0xff]
    %v212 = vld [vmem:[#allocation2 + $0x110] sm:$0xf]
    %v213 = vld [vmem:[#allocation2 + $0x114] sm:$0xff]
    %v214 = vld [vmem:[#allocation2 + $0x11c] sm:$0xf]
    %v215 = vld [vmem:[#allocation2 + $0x120] sm:$0xff]
    %v216 = vld [vmem:[#allocation2 + $0x128] sm:$0xf]
    %v217 = vld [vmem:[#allocation2 + $0x12c] sm:$0xff]
    %v218 = vld [vmem:[#allocation2 + $0x134] sm:$0xf]
    %v219 = vld [vmem:[#allocation2 + $0x138] sm:$0xff]
    %v220 = vld [vmem:[#allocation2 + $0x140] sm:$0xf]
    %v221 = vld [vmem:[#allocation2 + $0x144] sm:$0xff]
    %v222 = vld [vmem:[#allocation2 + $0x14c] sm:$0xf]
    %v223 = vld [vmem:[#allocation2 + $0x150] sm:$0xff]
    %v224 = vld [vmem:[#allocation2 + $0x158] sm:$0xf]
    %v225 = vld [vmem:[#allocation2 + $0x15c] sm:$0xff]
    %v226 = vld [vmem:[#allocation2 + $0x164] sm:$0xf]
    %v227 = vld [vmem:[#allocation2 + $0x168] sm:$0xff]
    %v228 = vld [vmem:[#allocation2 + $0x170] sm:$0xf]
    %v229 = vld [vmem:[#allocation2 + $0x174] sm:$0xff]
    %v230 = vld [vmem:[#allocation2 + $0x17c] sm:$0xf]
    %v231 = vld [vmem:[#allocation2 + $0x180] sm:$0xff]
    %v232 = vld [vmem:[#allocation2 + $0x188] sm:$0xf]
    %v233 = vld [vmem:[#allocation2 + $0x18c] sm:$0xff]
    %v234 = vld [vmem:[#allocation2 + $0x194] sm:$0xf]
    %v235 = vld [vmem:[#allocation2 + $0x198] sm:$0xff]
    %v236 = vld [vmem:[#allocation2 + $0x1a0] sm:$0xf]
    %v237 = vld [vmem:[#allocation2 + $0x1a4] sm:$0xff]
    %v238 = vld [vmem:[#allocation2 + $0x1ac] sm:$0xf]
    %v239 = vld [vmem:[#allocation2 + $0x1b0] sm:$0xff]
    %v240 = vld [vmem:[#allocation2 + $0x1b8] sm:$0xf]
    %v241 = vld [vmem:[#allocation2 + $0x1bc] sm:$0xff]
    %v242 = vld [vmem:[#allocation2 + $0x1c4] sm:$0xf]
    %v243 = vld [vmem:[#allocation2 + $0x1c8] sm:$0xff]
    %v244 = vld [vmem:[#allocation2 + $0x1d0] sm:$0xf]
    %v245 = vld [vmem:[#allocation2 + $0x1d4] sm:$0xff]
    %v246 = vld [vmem:[#allocation2 + $0x1dc] sm:$0xf]
    %v247 = vld [vmem:[#allocation2 + $0x1e0] sm:$0xff]
    %v248 = vld [vmem:[#allocation2 + $0x1e8] sm:$0xf]
    %v249 = vld [vmem:[#allocation2 + $0x1ec] sm:$0xff]
    %v250 = vld [vmem:[#allocation2 + $0x1f4] sm:$0xf]
    %v251 = vld [vmem:[#allocation2 + $0x1f8] sm:$0xff]
    %v252 = vld [vmem:[#allocation2 + $0x200] sm:$0xf]
    %v253 = vld [vmem:[#allocation2 + $0x204] sm:$0xff]
    %v254 = vld [vmem:[#allocation2 + $0x20c] sm:$0xf]
    %v255 = vld [vmem:[#allocation2 + $0x210] sm:$0xff]
    %v256 = vld [vmem:[#allocation2 + $0x218] sm:$0xf]
    %v257 = vld [vmem:[#allocation2 + $0x21c] sm:$0xff]
    %v258 = vld [vmem:[#allocation2 + $0x224] sm:$0xf]
    %v259 = vld [vmem:[#allocation2 + $0x228] sm:$0xff]
    %v260 = vld [vmem:[#allocation2 + $0x230] sm:$0xf]
    %v261 = vld [vmem:[#allocation2 + $0x234] sm:$0xff]
    %v262 = vld [vmem:[#allocation2 + $0x23c] sm:$0xf]
    %v263 = vld [vmem:[#allocation2 + $0x240] sm:$0xff]
    %v264 = vld [vmem:[#allocation2 + $0x248] sm:$0xf]
    %v265 = vld [vmem:[#allocation2 + $0x24c] sm:$0xff]
    %v266 = vld [vmem:[#allocation2 + $0x254] sm:$0xf]
    %v267 = vld [vmem:[#allocation2 + $0x258] sm:$0xff]
    %v268 = vld [vmem:[#allocation2 + $0x260] sm:$0xf]
    %v269 = vld [vmem:[#allocation2 + $0x264] sm:$0xff]
    %v270 = vld [vmem:[#allocation2 + $0x26c] sm:$0xf]
    %v271 = vld [vmem:[#allocation2 + $0x270] sm:$0xff]
    %v272 = vld [vmem:[#allocation2 + $0x278] sm:$0xf]
    %v273 = vld [vmem:[#allocation2 + $0x27c] sm:$0xff]
    %v274 = vld [vmem:[#allocation2 + $0x284] sm:$0xf]
    %v275 = vld [vmem:[#allocation2 + $0x288] sm:$0xff]
    %v276 = vld [vmem:[#allocation2 + $0x290] sm:$0xf]
    %v277 = vld [vmem:[#allocation2 + $0x294] sm:$0xff]
    %v278 = vld [vmem:[#allocation2 + $0x29c] sm:$0xf]
    %v279 = vld [vmem:[#allocation2 + $0x2a0] sm:$0xff]
    %v280 = vld [vmem:[#allocation2 + $0x2a8] sm:$0xf]
    %v281 = vld [vmem:[#allocation2 + $0x2ac] sm:$0xff]
    %v282 = vld [vmem:[#allocation2 + $0x2b4] sm:$0xf]
    %v283 = vld [vmem:[#allocation2 + $0x2b8] sm:$0xff]
    %v284 = vld [vmem:[#allocation2 + $0x2c0] sm:$0xf]
    %v285 = vld [vmem:[#allocation2 + $0x2c4] sm:$0xff]
    %v286 = vld [vmem:[#allocation2 + $0x2cc] sm:$0xf]
    %v287 = vld [vmem:[#allocation2 + $0x2d0] sm:$0xff]
    %v288 = vld [vmem:[#allocation2 + $0x2d8] sm:$0xf]
    %v289 = vld [vmem:[#allocation2 + $0x2dc] sm:$0xff]
    %v290 = vld [vmem:[#allocation2 + $0x2e4] sm:$0xf]
    %v291 = vld [vmem:[#allocation2 + $0x2e8] sm:$0xff]
    %v292 = vld [vmem:[#allocation2 + $0x2f0] sm:$0xf]
    %v293 = vld [vmem:[#allocation2 + $0x2f4] sm:$0xff]
    %v294 = vld [vmem:[#allocation2 + $0x2fc] sm:$0xf]
    %v295 = vld [vmem:[%s4] sm:$0x7]
    %v297 = vperm.slane %v295, 0
    %v298 = vperm.slane %v295, 1
    %v299 = vperm.slane %v295, 2
    %v431 = vunpack.c.l.b16 %v167
    %v432 = vunpack.c.h.b16 %v167
    %v433 = vunpack.c.l.b16 %v168
    %v434 = vunpack.c.l.b16 %v169
    %v435 = vunpack.c.h.b16 %v169
    %v436 = vunpack.c.l.b16 %v170
    %v437 = vunpack.c.l.b16 %v171
    %v438 = vunpack.c.h.b16 %v171
    %v439 = vunpack.c.l.b16 %v172
    %v440 = vunpack.c.l.b16 %v173
    %v441 = vunpack.c.h.b16 %v173
    %v442 = vunpack.c.l.b16 %v174
    %v443 = vunpack.c.l.b16 %v175
    %v444 = vunpack.c.h.b16 %v175
    %v445 = vunpack.c.l.b16 %v176
    %v446 = vunpack.c.l.b16 %v177
    %v447 = vunpack.c.h.b16 %v177
    %v448 = vunpack.c.l.b16 %v178
    %v449 = vunpack.c.l.b16 %v179
    %v450 = vunpack.c.h.b16 %v179
    %v451 = vunpack.c.l.b16 %v180
    %v452 = vunpack.c.l.b16 %v181
    %v453 = vunpack.c.h.b16 %v181
    %v454 = vunpack.c.l.b16 %v182
    %v455 = vunpack.c.l.b16 %v183
    %v456 = vunpack.c.h.b16 %v183
    %v457 = vunpack.c.l.b16 %v184
    %v458 = vunpack.c.l.b16 %v185
    %v459 = vunpack.c.h.b16 %v185
    %v460 = vunpack.c.l.b16 %v186
    %v461 = vunpack.c.l.b16 %v187
    %v462 = vunpack.c.h.b16 %v187
    %v463 = vunpack.c.l.b16 %v188
    %v464 = vunpack.c.l.b16 %v189
    %v465 = vunpack.c.h.b16 %v189
    %v466 = vunpack.c.l.b16 %v190
    %v467 = vunpack.c.l.b16 %v191
    %v468 = vunpack.c.h.b16 %v191
    %v469 = vunpack.c.l.b16 %v192
    %v470 = vunpack.c.l.b16 %v193
    %v471 = vunpack.c.h.b16 %v193
    %v472 = vunpack.c.l.b16 %v194
    %v473 = vunpack.c.l.b16 %v195
    %v474 = vunpack.c.h.b16 %v195
    %v475 = vunpack.c.l.b16 %v196
    %v476 = vunpack.c.l.b16 %v197
    %v477 = vunpack.c.h.b16 %v197
    %v478 = vunpack.c.l.b16 %v198
    %v479 = vunpack.c.l.b16 %v199
    %v480 = vunpack.c.h.b16 %v199
    %v481 = vunpack.c.l.b16 %v200
    %v482 = vunpack.c.l.b16 %v201
    %v483 = vunpack.c.h.b16 %v201
    %v484 = vunpack.c.l.b16 %v202
    %v485 = vunpack.c.l.b16 %v203
    %v486 = vunpack.c.h.b16 %v203
    %v487 = vunpack.c.l.b16 %v204
    %v488 = vunpack.c.l.b16 %v205
    %v489 = vunpack.c.h.b16 %v205
    %v490 = vunpack.c.l.b16 %v206
    %v491 = vunpack.c.l.b16 %v207
    %v492 = vunpack.c.h.b16 %v207
    %v493 = vunpack.c.l.b16 %v208
    %v494 = vunpack.c.l.b16 %v209
    %v495 = vunpack.c.h.b16 %v209
    %v496 = vunpack.c.l.b16 %v210
    %v497 = vunpack.c.l.b16 %v211
    %v498 = vunpack.c.h.b16 %v211
    %v499 = vunpack.c.l.b16 %v212
    %v500 = vunpack.c.l.b16 %v213
    %v501 = vunpack.c.h.b16 %v213
    %v502 = vunpack.c.l.b16 %v214
    %v503 = vunpack.c.l.b16 %v215
    %v504 = vunpack.c.h.b16 %v215
    %v505 = vunpack.c.l.b16 %v216
    %v506 = vunpack.c.l.b16 %v217
    %v507 = vunpack.c.h.b16 %v217
    %v508 = vunpack.c.l.b16 %v218
    %v509 = vunpack.c.l.b16 %v219
    %v510 = vunpack.c.h.b16 %v219
    %v511 = vunpack.c.l.b16 %v220
    %v512 = vunpack.c.l.b16 %v221
    %v513 = vunpack.c.h.b16 %v221
    %v514 = vunpack.c.l.b16 %v222
    %v515 = vunpack.c.l.b16 %v223
    %v516 = vunpack.c.h.b16 %v223
    %v517 = vunpack.c.l.b16 %v224
    %v518 = vunpack.c.l.b16 %v225
    %v519 = vunpack.c.h.b16 %v225
    %v520 = vunpack.c.l.b16 %v226
    %v521 = vunpack.c.l.b16 %v227
    %v522 = vunpack.c.h.b16 %v227
    %v523 = vunpack.c.l.b16 %v228
    %v524 = vunpack.c.l.b16 %v229
    %v525 = vunpack.c.h.b16 %v229
    %v526 = vunpack.c.l.b16 %v230
    %v527 = vunpack.c.l.b16 %v231
    %v528 = vunpack.c.h.b16 %v231
    %v529 = vunpack.c.l.b16 %v232
    %v530 = vunpack.c.l.b16 %v233
    %v531 = vunpack.c.h.b16 %v233
    %v532 = vunpack.c.l.b16 %v234
    %v533 = vunpack.c.l.b16 %v235
    %v534 = vunpack.c.h.b16 %v235
    %v535 = vunpack.c.l.b16 %v236
    %v536 = vunpack.c.l.b16 %v237
    %v537 = vunpack.c.h.b16 %v237
    %v538 = vunpack.c.l.b16 %v238
    %v539 = vunpack.c.l.b16 %v239
    %v540 = vunpack.c.h.b16 %v239
    %v541 = vunpack.c.l.b16 %v240
    %v542 = vunpack.c.l.b16 %v241
    %v543 = vunpack.c.h.b16 %v241
    %v544 = vunpack.c.l.b16 %v242
    %v545 = vunpack.c.l.b16 %v243
    %v546 = vunpack.c.h.b16 %v243
    %v547 = vunpack.c.l.b16 %v244
    %v548 = vunpack.c.l.b16 %v245
    %v549 = vunpack.c.h.b16 %v245
    %v550 = vunpack.c.l.b16 %v246
    %v551 = vunpack.c.l.b16 %v247
    %v552 = vunpack.c.h.b16 %v247
    %v553 = vunpack.c.l.b16 %v248
    %v554 = vunpack.c.l.b16 %v249
    %v555 = vunpack.c.h.b16 %v249
    %v556 = vunpack.c.l.b16 %v250
    %v557 = vunpack.c.l.b16 %v251
    %v558 = vunpack.c.h.b16 %v251
    %v559 = vunpack.c.l.b16 %v252
    %v560 = vunpack.c.l.b16 %v253
    %v561 = vunpack.c.h.b16 %v253
    %v562 = vunpack.c.l.b16 %v254
    %v563 = vunpack.c.l.b16 %v255
    %v564 = vunpack.c.h.b16 %v255
    %v565 = vunpack.c.l.b16 %v256
    %v566 = vunpack.c.l.b16 %v257
    %v567 = vunpack.c.h.b16 %v257
    %v568 = vunpack.c.l.b16 %v258
    %v569 = vunpack.c.l.b16 %v259
    %v570 = vunpack.c.h.b16 %v259
    %v571 = vunpack.c.l.b16 %v260
    %v572 = vunpack.c.l.b16 %v261
    %v573 = vunpack.c.h.b16 %v261
    %v574 = vunpack.c.l.b16 %v262
    %v575 = vunpack.c.l.b16 %v263
    %v576 = vunpack.c.h.b16 %v263
    %v577 = vunpack.c.l.b16 %v264
    %v578 = vunpack.c.l.b16 %v265
    %v579 = vunpack.c.h.b16 %v265
    %v580 = vunpack.c.l.b16 %v266
    %v581 = vunpack.c.l.b16 %v267
    %v582 = vunpack.c.h.b16 %v267
    %v583 = vunpack.c.l.b16 %v268
    %v584 = vunpack.c.l.b16 %v269
    %v585 = vunpack.c.h.b16 %v269
    %v586 = vunpack.c.l.b16 %v270
    %v587 = vunpack.c.l.b16 %v271
    %v588 = vunpack.c.h.b16 %v271
    %v589 = vunpack.c.l.b16 %v272
    %v590 = vunpack.c.l.b16 %v273
    %v591 = vunpack.c.h.b16 %v273
    %v592 = vunpack.c.l.b16 %v274
    %v593 = vunpack.c.l.b16 %v275
    %v594 = vunpack.c.h.b16 %v275
    %v595 = vunpack.c.l.b16 %v276
    %v596 = vunpack.c.l.b16 %v277
    %v597 = vunpack.c.h.b16 %v277
    %v598 = vunpack.c.l.b16 %v278
    %v599 = vunpack.c.l.b16 %v279
    %v600 = vunpack.c.h.b16 %v279
    %v601 = vunpack.c.l.b16 %v280
    %v602 = vunpack.c.l.b16 %v281
    %v603 = vunpack.c.h.b16 %v281
    %v604 = vunpack.c.l.b16 %v282
    %v605 = vunpack.c.l.b16 %v283
    %v606 = vunpack.c.h.b16 %v283
    %v607 = vunpack.c.l.b16 %v284
    %v608 = vunpack.c.l.b16 %v285
    %v609 = vunpack.c.h.b16 %v285
    %v610 = vunpack.c.l.b16 %v286
    %v611 = vunpack.c.l.b16 %v287
    %v612 = vunpack.c.h.b16 %v287
    %v613 = vunpack.c.l.b16 %v288
    %v614 = vunpack.c.l.b16 %v289
    %v615 = vunpack.c.h.b16 %v289
    %v616 = vunpack.c.l.b16 %v290
    %v617 = vunpack.c.l.b16 %v291
    %v618 = vunpack.c.h.b16 %v291
    %v619 = vunpack.c.l.b16 %v292
    %v620 = vunpack.c.l.b16 %v293
    %v621 = vunpack.c.h.b16 %v293
    %v622 = vunpack.c.l.b16 %v294
    %v623 = vpack.c.b16 %v434, %v431
    %v624 = vpack.c.b16 %v435, %v432
    %v625 = vpack.c.b16 %v436, %v433
    %v626 = vpack.c.b16 %v440, %v437
    %v627 = vpack.c.b16 %v441, %v438
    %v628 = vpack.c.b16 %v442, %v439
    %v629 = vpack.c.b16 %v446, %v443
    %v630 = vpack.c.b16 %v447, %v444
    %v631 = vpack.c.b16 %v448, %v445
    %v632 = vpack.c.b16 %v452, %v449
    %v633 = vpack.c.b16 %v453, %v450
    %v634 = vpack.c.b16 %v454, %v451
    %v635 = vpack.c.b16 %v458, %v455
    %v636 = vpack.c.b16 %v459, %v456
    %v637 = vpack.c.b16 %v460, %v457
    %v638 = vpack.c.b16 %v464, %v461
    %v639 = vpack.c.b16 %v465, %v462
    %v640 = vpack.c.b16 %v466, %v463
    %v641 = vpack.c.b16 %v470, %v467
    %v642 = vpack.c.b16 %v471, %v468
    %v643 = vpack.c.b16 %v472, %v469
    %v644 = vpack.c.b16 %v476, %v473
    %v645 = vpack.c.b16 %v477, %v474
    %v646 = vpack.c.b16 %v478, %v475
    %v647 = vpack.c.b16 %v482, %v479
    %v648 = vpack.c.b16 %v483, %v480
    %v649 = vpack.c.b16 %v484, %v481
    %v650 = vpack.c.b16 %v488, %v485
    %v651 = vpack.c.b16 %v489, %v486
    %v652 = vpack.c.b16 %v490, %v487
    %v653 = vpack.c.b16 %v494, %v491
    %v654 = vpack.c.b16 %v495, %v492
    %v655 = vpack.c.b16 %v496, %v493
    %v656 = vpack.c.b16 %v500, %v497
    %v657 = vpack.c.b16 %v501, %v498
    %v658 = vpack.c.b16 %v502, %v499
    %v659 = vpack.c.b16 %v506, %v503
    %v660 = vpack.c.b16 %v507, %v504
    %v661 = vpack.c.b16 %v508, %v505
    %v662 = vpack.c.b16 %v512, %v509
    %v663 = vpack.c.b16 %v513, %v510
    %v664 = vpack.c.b16 %v514, %v511
    %v665 = vpack.c.b16 %v518, %v515
    %v666 = vpack.c.b16 %v519, %v516
    %v667 = vpack.c.b16 %v520, %v517
    %v668 = vpack.c.b16 %v524, %v521
    %v669 = vpack.c.b16 %v525, %v522
    %v670 = vpack.c.b16 %v526, %v523
    %v671 = vpack.c.b16 %v530, %v527
    %v672 = vpack.c.b16 %v531, %v528
    %v673 = vpack.c.b16 %v532, %v529
    %v674 = vpack.c.b16 %v536, %v533
    %v675 = vpack.c.b16 %v537, %v534
    %v676 = vpack.c.b16 %v538, %v535
    %v677 = vpack.c.b16 %v542, %v539
    %v678 = vpack.c.b16 %v543, %v540
    %v679 = vpack.c.b16 %v544, %v541
    %v680 = vpack.c.b16 %v548, %v545
    %v681 = vpack.c.b16 %v549, %v546
    %v682 = vpack.c.b16 %v550, %v547
    %v683 = vpack.c.b16 %v554, %v551
    %v684 = vpack.c.b16 %v555, %v552
    %v685 = vpack.c.b16 %v556, %v553
    %v686 = vpack.c.b16 %v560, %v557
    %v687 = vpack.c.b16 %v561, %v558
    %v688 = vpack.c.b16 %v562, %v559
    %v689 = vpack.c.b16 %v566, %v563
    %v690 = vpack.c.b16 %v567, %v564
    %v691 = vpack.c.b16 %v568, %v565
    %v692 = vpack.c.b16 %v572, %v569
    %v693 = vpack.c.b16 %v573, %v570
    %v694 = vpack.c.b16 %v574, %v571
    %v695 = vpack.c.b16 %v578, %v575
    %v696 = vpack.c.b16 %v579, %v576
    %v697 = vpack.c.b16 %v580, %v577
    %v698 = vpack.c.b16 %v584, %v581
    %v699 = vpack.c.b16 %v585, %v582
    %v700 = vpack.c.b16 %v586, %v583
    %v701 = vpack.c.b16 %v590, %v587
    %v702 = vpack.c.b16 %v591, %v588
    %v703 = vpack.c.b16 %v592, %v589
    %v704 = vpack.c.b16 %v596, %v593
    %v705 = vpack.c.b16 %v597, %v594
    %v706 = vpack.c.b16 %v598, %v595
    %v707 = vpack.c.b16 %v602, %v599
    %v708 = vpack.c.b16 %v603, %v600
    %v709 = vpack.c.b16 %v604, %v601
    %v710 = vpack.c.b16 %v608, %v605
    %v711 = vpack.c.b16 %v609, %v606
    %v712 = vpack.c.b16 %v610, %v607
    %v713 = vpack.c.b16 %v614, %v611
    %v714 = vpack.c.b16 %v615, %v612
    %v715 = vpack.c.b16 %v616, %v613
    %v716 = vpack.c.b16 %v620, %v617
    %v717 = vpack.c.b16 %v621, %v618
    %v718 = vpack.c.b16 %v622, %v619
    %815 = vmatpush.bf16.msra.mxu0 %v644
    %816 = vmatpush.bf16.msra.mxu0 %v641
    %817 = vmatpush.bf16.msra.mxu0 %v638
    %818 = vmatpush.bf16.msra.mxu0 %v635
    %819 = vmatpush.bf16.msra.mxu0 %v632
    %820 = vmatpush.bf16.msra.mxu0 %v629
    %821 = vmatpush.bf16.msra.mxu0 %v626
    %822 = vmatpush.bf16.msra.mxu0 %v623
    %823 = vmatmul.bf16.gmra.mxu0 %v163
    %v824 = vpop.f32.mrf.mxu0
    %v825 = vadd.f32 %v297, %v824
    %v826 = vpop.f32.mrf.mxu0
    %827 = vdwg.mxu0
    %828 = vmatpush.bf16.msra.mxu0 %v668
    %829 = vmatpush.bf16.msra.mxu0 %v665
    %830 = vmatpush.bf16.msra.mxu0 %v662
    %831 = vmatpush.bf16.msra.mxu0 %v659
    %832 = vmatpush.bf16.msra.mxu0 %v656
    %833 = vmatpush.bf16.msra.mxu0 %v653
    %834 = vmatpush.bf16.msra.mxu0 %v650
    %835 = vmatpush.bf16.msra.mxu0 %v647
    %836 = vmatmul.bf16.gmra.mxu0 %v164
    %v837 = vpop.f32.mrf.mxu0
    %v838 = vadd.f32 %v825, %v837
    %v839 = vpop.f32.mrf.mxu0
    %840 = vdwg.mxu0
    %841 = vmatpush.bf16.msra.mxu0 %v692
    %842 = vmatpush.bf16.msra.mxu0 %v689
    %843 = vmatpush.bf16.msra.mxu0 %v686
    %844 = vmatpush.bf16.msra.mxu0 %v683
    %845 = vmatpush.bf16.msra.mxu0 %v680
    %846 = vmatpush.bf16.msra.mxu0 %v677
    %847 = vmatpush.bf16.msra.mxu0 %v674
    %848 = vmatpush.bf16.msra.mxu0 %v671
    %849 = vmatmul.bf16.gmra.mxu0 %v165
    %v850 = vpop.f32.mrf.mxu0
    %v851 = vadd.f32 %v838, %v850
    %v852 = vpop.f32.mrf.mxu0
    %853 = vdwg.mxu0
    %854 = vmatpush.bf16.msra.mxu0 %v716
    %855 = vmatpush.bf16.msra.mxu0 %v713
    %856 = vmatpush.bf16.msra.mxu0 %v710
    %857 = vmatpush.bf16.msra.mxu0 %v707
    %858 = vmatpush.bf16.msra.mxu0 %v704
    %859 = vmatpush.bf16.msra.mxu0 %v701
    %860 = vmatpush.bf16.msra.mxu0 %v698
    %861 = vmatpush.bf16.msra.mxu0 %v695
    %862 = vmatmul.bf16.gmra.mxu0 %v166
    %v863 = vpop.f32.mrf.mxu0
    %v864 = vadd.f32 %v851, %v863
    %v865 = vpop.f32.mrf.mxu0
    %866 = vdwg.mxu0
    %867 = vmatpush.bf16.msra.mxu0 %v645
    %868 = vmatpush.bf16.msra.mxu0 %v642
    %869 = vmatpush.bf16.msra.mxu0 %v639
    %870 = vmatpush.bf16.msra.mxu0 %v636
    %871 = vmatpush.bf16.msra.mxu0 %v633
    %872 = vmatpush.bf16.msra.mxu0 %v630
    %873 = vmatpush.bf16.msra.mxu0 %v627
    %874 = vmatpush.bf16.msra.mxu0 %v624
    %875 = vmatmul.bf16.gmra.mxu0 %v163
    %v876 = vpop.f32.mrf.mxu0
    %v877 = vadd.f32 %v298, %v876
    %v878 = vpop.f32.mrf.mxu0
    %879 = vdwg.mxu0
    %880 = vmatpush.bf16.msra.mxu0 %v669
    %881 = vmatpush.bf16.msra.mxu0 %v666
    %882 = vmatpush.bf16.msra.mxu0 %v663
    %883 = vmatpush.bf16.msra.mxu0 %v660
    %884 = vmatpush.bf16.msra.mxu0 %v657
    %885 = vmatpush.bf16.msra.mxu0 %v654
    %886 = vmatpush.bf16.msra.mxu0 %v651
    %887 = vmatpush.bf16.msra.mxu0 %v648
    %888 = vmatmul.bf16.gmra.mxu0 %v164
    %v889 = vpop.f32.mrf.mxu0
    %v890 = vadd.f32 %v877, %v889
    %v891 = vpop.f32.mrf.mxu0
    %892 = vdwg.mxu0
    %893 = vmatpush.bf16.msra.mxu0 %v693
    %894 = vmatpush.bf16.msra.mxu0 %v690
    %895 = vmatpush.bf16.msra.mxu0 %v687
    %896 = vmatpush.bf16.msra.mxu0 %v684
    %897 = vmatpush.bf16.msra.mxu0 %v681
    %898 = vmatpush.bf16.msra.mxu0 %v678
    %899 = vmatpush.bf16.msra.mxu0 %v675
    %900 = vmatpush.bf16.msra.mxu0 %v672
    %901 = vmatmul.bf16.gmra.mxu0 %v165
    %v902 = vpop.f32.mrf.mxu0
    %v903 = vadd.f32 %v890, %v902
    %v904 = vpop.f32.mrf.mxu0
    %905 = vdwg.mxu0
    %906 = vmatpush.bf16.msra.mxu0 %v717
    %907 = vmatpush.bf16.msra.mxu0 %v714
    %908 = vmatpush.bf16.msra.mxu0 %v711
    %909 = vmatpush.bf16.msra.mxu0 %v708
    %910 = vmatpush.bf16.msra.mxu0 %v705
    %911 = vmatpush.bf16.msra.mxu0 %v702
    %912 = vmatpush.bf16.msra.mxu0 %v699
    %913 = vmatpush.bf16.msra.mxu0 %v696
    %914 = vmatmul.bf16.gmra.mxu0 %v166
    %v915 = vpop.f32.mrf.mxu0
    %v916 = vadd.f32 %v903, %v915
    %v917 = vpop.f32.mrf.mxu0
    %918 = vdwg.mxu0
    %919 = vmatpush.bf16.msra.mxu0 %v646
    %920 = vmatpush.bf16.msra.mxu0 %v643
    %921 = vmatpush.bf16.msra.mxu0 %v640
    %922 = vmatpush.bf16.msra.mxu0 %v637
    %923 = vmatpush.bf16.msra.mxu0 %v634
    %924 = vmatpush.bf16.msra.mxu0 %v631
    %925 = vmatpush.bf16.msra.mxu0 %v628
    %926 = vmatpush.bf16.msra.mxu0 %v625
    %927 = vmatmul.bf16.gmra.mxu0 %v163
    %v928 = vpop.f32.mrf.mxu0
    %v929 = vadd.f32 %v299, %v928
    %v930 = vpop.f32.mrf.mxu0
    %931 = vdwg.mxu0
    %932 = vmatpush.bf16.msra.mxu0 %v670
    %933 = vmatpush.bf16.msra.mxu0 %v667
    %934 = vmatpush.bf16.msra.mxu0 %v664
    %935 = vmatpush.bf16.msra.mxu0 %v661
    %936 = vmatpush.bf16.msra.mxu0 %v658
    %937 = vmatpush.bf16.msra.mxu0 %v655
    %938 = vmatpush.bf16.msra.mxu0 %v652
    %939 = vmatpush.bf16.msra.mxu0 %v649
    %940 = vmatmul.bf16.gmra.mxu0 %v164
    %v941 = vpop.f32.mrf.mxu0
    %v942 = vadd.f32 %v929, %v941
    %v943 = vpop.f32.mrf.mxu0
    %944 = vdwg.mxu0
    %945 = vmatpush.bf16.msra.mxu0 %v694
    %946 = vmatpush.bf16.msra.mxu0 %v691
    %947 = vmatpush.bf16.msra.mxu0 %v688
    %948 = vmatpush.bf16.msra.mxu0 %v685
    %949 = vmatpush.bf16.msra.mxu0 %v682
    %950 = vmatpush.bf16.msra.mxu0 %v679
    %951 = vmatpush.bf16.msra.mxu0 %v676
    %952 = vmatpush.bf16.msra.mxu0 %v673
    %953 = vmatmul.bf16.gmra.mxu0 %v165
    %v954 = vpop.f32.mrf.mxu0
    %v955 = vadd.f32 %v942, %v954
    %v956 = vpop.f32.mrf.mxu0
    %957 = vdwg.mxu0
    %958 = vmatpush.bf16.msra.mxu0 %v718
    %959 = vmatpush.bf16.msra.mxu0 %v715
    %960 = vmatpush.bf16.msra.mxu0 %v712
    %961 = vmatpush.bf16.msra.mxu0 %v709
    %962 = vmatpush.bf16.msra.mxu0 %v706
    %963 = vmatpush.bf16.msra.mxu0 %v703
    %964 = vmatpush.bf16.msra.mxu0 %v700
    %965 = vmatpush.bf16.msra.mxu0 %v697
    %966 = vmatmul.bf16.gmra.mxu0 %v166
    %v967 = vpop.f32.mrf.mxu0
    %v968 = vadd.f32 %v955, %v967
    %v969 = vpop.f32.mrf.mxu0
    %970 = vdwg.mxu0
    %v971 = vmax.f32 %v864, 0.0
    %v972 = vmax.f32 %v916, 0.0
    %v973 = vmax.f32 %v968, 0.0
    %v974 = vpack.c.bf16 %v971, %v971
    %v975 = vpack.c.bf16 %v972, %v972
    %v976 = vpack.c.bf16 %v973, %v973
    %v977 = vld [vmem:[%s5] sm:$0xf]
    %v978 = vld [vmem:[%s5 + $0x4] sm:$0xf]
    %v979 = vld [vmem:[%s5 + $0x8] sm:$0xf]
    %v980 = vld [vmem:[%s5 + $0xc] sm:$0xf]
    %v981 = vld [vmem:[%s5 + $0x10] sm:$0xf]
    %v982 = vld [vmem:[%s5 + $0x14] sm:$0xf]
    %v983 = vld [vmem:[%s5 + $0x18] sm:$0xf]
    %v984 = vld [vmem:[%s5 + $0x1c] sm:$0xf]
    %v985 = vld [vmem:[%s5 + $0x20] sm:$0xf]
    %v986 = vld [vmem:[%s5 + $0x24] sm:$0xf]
    %v987 = vld [vmem:[%s5 + $0x28] sm:$0xf]
    %v988 = vld [vmem:[%s5 + $0x2c] sm:$0xf]
    %v989 = vld [vmem:[%s5 + $0x30] sm:$0xf]
    %v990 = vld [vmem:[%s5 + $0x34] sm:$0xf]
    %v991 = vld [vmem:[%s5 + $0x38] sm:$0xf]
    %v992 = vld [vmem:[%s5 + $0x3c] sm:$0xf]
    %v993 = vld [vmem:[%s5 + $0x40] sm:$0xf]
    %v994 = vld [vmem:[%s5 + $0x44] sm:$0xf]
    %v995 = vld [vmem:[%s5 + $0x48] sm:$0xf]
    %v996 = vld [vmem:[%s5 + $0x4c] sm:$0xf]
    %v997 = vld [vmem:[%s5 + $0x50] sm:$0xf]
    %v998 = vld [vmem:[%s5 + $0x54] sm:$0xf]
    %v999 = vld [vmem:[%s5 + $0x58] sm:$0xf]
    %v1000 = vld [vmem:[%s5 + $0x5c] sm:$0xf]
    %v1001 = vld [vmem:[%s5 + $0x60] sm:$0xf]
    %v1002 = vld [vmem:[%s5 + $0x64] sm:$0xf]
    %v1003 = vld [vmem:[%s5 + $0x68] sm:$0xf]
    %v1004 = vld [vmem:[%s5 + $0x6c] sm:$0xf]
    %v1005 = vld [vmem:[%s5 + $0x70] sm:$0xf]
    %v1006 = vld [vmem:[%s5 + $0x74] sm:$0xf]
    %v1007 = vld [vmem:[%s5 + $0x78] sm:$0xf]
    %v1008 = vld [vmem:[%s5 + $0x7c] sm:$0xf]
    %v1009 = vld [vmem:[%s5 + $0x80] sm:$0xf]
    %v1010 = vld [vmem:[%s5 + $0x84] sm:$0xf]
    %v1011 = vld [vmem:[%s5 + $0x88] sm:$0xf]
    %v1012 = vld [vmem:[%s5 + $0x8c] sm:$0xf]
    %v1013 = vld [vmem:[%s5 + $0x90] sm:$0xf]
    %v1014 = vld [vmem:[%s5 + $0x94] sm:$0xf]
    %v1015 = vld [vmem:[%s5 + $0x98] sm:$0xf]
    %v1016 = vld [vmem:[%s5 + $0x9c] sm:$0xf]
    %v1017 = vld [vmem:[%s5 + $0xa0] sm:$0xf]
    %v1018 = vld [vmem:[%s5 + $0xa4] sm:$0xf]
    %v1019 = vld [vmem:[%s5 + $0xa8] sm:$0xf]
    %v1020 = vld [vmem:[%s5 + $0xac] sm:$0xf]
    %v1021 = vld [vmem:[%s5 + $0xb0] sm:$0xf]
    %v1022 = vld [vmem:[%s5 + $0xb4] sm:$0xf]
    %v1023 = vld [vmem:[%s5 + $0xb8] sm:$0xf]
    %v1024 = vld [vmem:[%s5 + $0xbc] sm:$0xf]
    %v1025 = vld [vmem:[%s6] sm:$0x1]
    %v1027 = vperm.slane %v1025, 0
    %v1077 = vunpack.c.l.b16 %v977
    %v1078 = vunpack.c.l.b16 %v978
    %v1079 = vunpack.c.l.b16 %v979
    %v1080 = vunpack.c.l.b16 %v980
    %v1081 = vunpack.c.l.b16 %v981
    %v1082 = vunpack.c.l.b16 %v982
    %v1083 = vunpack.c.l.b16 %v983
    %v1084 = vunpack.c.l.b16 %v984
    %v1085 = vunpack.c.l.b16 %v985
    %v1086 = vunpack.c.l.b16 %v986
    %v1087 = vunpack.c.l.b16 %v987
    %v1088 = vunpack.c.l.b16 %v988
    %v1089 = vunpack.c.l.b16 %v989
    %v1090 = vunpack.c.l.b16 %v990
    %v1091 = vunpack.c.l.b16 %v991
    %v1092 = vunpack.c.l.b16 %v992
    %v1093 = vunpack.c.l.b16 %v993
    %v1094 = vunpack.c.l.b16 %v994
    %v1095 = vunpack.c.l.b16 %v995
    %v1096 = vunpack.c.l.b16 %v996
    %v1097 = vunpack.c.l.b16 %v997
    %v1098 = vunpack.c.l.b16 %v998
    %v1099 = vunpack.c.l.b16 %v999
    %v1100 = vunpack.c.l.b16 %v1000
    %v1101 = vunpack.c.l.b16 %v1001
    %v1102 = vunpack.c.l.b16 %v1002
    %v1103 = vunpack.c.l.b16 %v1003
    %v1104 = vunpack.c.l.b16 %v1004
    %v1105 = vunpack.c.l.b16 %v1005
    %v1106 = vunpack.c.l.b16 %v1006
    %v1107 = vunpack.c.l.b16 %v1007
    %v1108 = vunpack.c.l.b16 %v1008
    %v1109 = vunpack.c.l.b16 %v1009
    %v1110 = vunpack.c.l.b16 %v1010
    %v1111 = vunpack.c.l.b16 %v1011
    %v1112 = vunpack.c.l.b16 %v1012
    %v1113 = vunpack.c.l.b16 %v1013
    %v1114 = vunpack.c.l.b16 %v1014
    %v1115 = vunpack.c.l.b16 %v1015
    %v1116 = vunpack.c.l.b16 %v1016
    %v1117 = vunpack.c.l.b16 %v1017
    %v1118 = vunpack.c.l.b16 %v1018
    %v1119 = vunpack.c.l.b16 %v1019
    %v1120 = vunpack.c.l.b16 %v1020
    %v1121 = vunpack.c.l.b16 %v1021
    %v1122 = vunpack.c.l.b16 %v1022
    %v1123 = vunpack.c.l.b16 %v1023
    %v1124 = vunpack.c.l.b16 %v1024
    %v1125 = vpack.c.b16 %v1078, %v1077
    %v1126 = vpack.c.b16 %v1080, %v1079
    %v1127 = vpack.c.b16 %v1082, %v1081
    %v1128 = vpack.c.b16 %v1084, %v1083
    %v1129 = vpack.c.b16 %v1086, %v1085
    %v1130 = vpack.c.b16 %v1088, %v1087
    %v1131 = vpack.c.b16 %v1090, %v1089
    %v1132 = vpack.c.b16 %v1092, %v1091
    %v1133 = vpack.c.b16 %v1094, %v1093
    %v1134 = vpack.c.b16 %v1096, %v1095
    %v1135 = vpack.c.b16 %v1098, %v1097
    %v1136 = vpack.c.b16 %v1100, %v1099
    %v1137 = vpack.c.b16 %v1102, %v1101
    %v1138 = vpack.c.b16 %v1104, %v1103
    %v1139 = vpack.c.b16 %v1106, %v1105
    %v1140 = vpack.c.b16 %v1108, %v1107
    %v1141 = vpack.c.b16 %v1110, %v1109
    %v1142 = vpack.c.b16 %v1112, %v1111
    %v1143 = vpack.c.b16 %v1114, %v1113
    %v1144 = vpack.c.b16 %v1116, %v1115
    %v1145 = vpack.c.b16 %v1118, %v1117
    %v1146 = vpack.c.b16 %v1120, %v1119
    %v1147 = vpack.c.b16 %v1122, %v1121
    %v1148 = vpack.c.b16 %v1124, %v1123
    %1173 = vmatpush.bf16.msra.mxu0 %v1132
    %1174 = vmatpush.bf16.msra.mxu0 %v1131
    %1175 = vmatpush.bf16.msra.mxu0 %v1130
    %1176 = vmatpush.bf16.msra.mxu0 %v1129
    %1177 = vmatpush.bf16.msra.mxu0 %v1128
    %1178 = vmatpush.bf16.msra.mxu0 %v1127
    %1179 = vmatpush.bf16.msra.mxu0 %v1126
    %1180 = vmatpush.bf16.msra.mxu0 %v1125
    %1181 = vmatmul.bf16.gmra.mxu0 %v974
    %v1182 = vpop.f32.mrf.mxu0
    %v1183 = vadd.f32 %v1027, %v1182
    %v1184 = vpop.f32.mrf.mxu0
    %1185 = vdwg.mxu0
    %1186 = vmatpush.bf16.msra.mxu0 %v1140
    %1187 = vmatpush.bf16.msra.mxu0 %v1139
    %1188 = vmatpush.bf16.msra.mxu0 %v1138
    %1189 = vmatpush.bf16.msra.mxu0 %v1137
    %1190 = vmatpush.bf16.msra.mxu0 %v1136
    %1191 = vmatpush.bf16.msra.mxu0 %v1135
    %1192 = vmatpush.bf16.msra.mxu0 %v1134
    %1193 = vmatpush.bf16.msra.mxu0 %v1133
    %1194 = vmatmul.bf16.gmra.mxu0 %v975
    %v1195 = vpop.f32.mrf.mxu0
    %v1196 = vadd.f32 %v1183, %v1195
    %v1197 = vpop.f32.mrf.mxu0
    %1198 = vdwg.mxu0
    %1199 = vmatpush.bf16.msra.mxu0 %v1148
    %1200 = vmatpush.bf16.msra.mxu0 %v1147
    %1201 = vmatpush.bf16.msra.mxu0 %v1146
    %1202 = vmatpush.bf16.msra.mxu0 %v1145
    %1203 = vmatpush.bf16.msra.mxu0 %v1144
    %1204 = vmatpush.bf16.msra.mxu0 %v1143
    %1205 = vmatpush.bf16.msra.mxu0 %v1142
    %1206 = vmatpush.bf16.msra.mxu0 %v1141
    %1207 = vmatmul.bf16.gmra.mxu0 %v976
    %v1208 = vpop.f32.mrf.mxu0
    %v1209 = vadd.f32 %v1196, %v1208
    %v1210 = vpop.f32.mrf.mxu0
    %1211 = vdwg.mxu0
    %v1212 = vtanh.pop %v1209
    %vm1213 = vcmask 64512
    %1214 = vst.msk [vmem:[%s7] sm:$0xff] %vm1213, %v1212
    // Predicated region
    $region34: #{actor_forward.1} parent=1 // pred_check
      _
    $region35: #{actor_forward.1} parent=1 // pred_check_branch
      %1216 = sbr.rel (0) target = $region37
    $region36: #{actor_forward.1} parent=1 // pred_region
      _
    $region37: #{actor_forward.1} parent=1 // pred_fallthru
      _
    // Predicated region
    $region38: #{actor_forward.1} parent=1 // pred_check
      _
    $region39: #{actor_forward.1} parent=1 // pred_check_branch
      %1218 = sbr.rel (0) target = $region41
    $region40: #{actor_forward.1} parent=1 // pred_region
      _
    $region41: #{actor_forward.1} parent=1 // pred_fallthru
      _
    %1219 = vsyncpa [#allocation3], 1

</llo_original>
